<compile_context>
chip_gen: v5e
topology: v5e:2x2
jax: 0.10.0
libtpu: 0.0.40
codegen_flags: <defaults>
</compile_context>

<pallas_src>
import functools
import math

import jax
import jax.numpy as jnp
from jax.experimental import pallas as pl
from jax.experimental.pallas import tpu as pltpu


def conv3x3_kernel(w_ref, x_ref, b_ref, o_ref, *, img_w: int, c_out: int):
    """One (C_out, TILE) output tile of a 3x3 same-padding conv.

    w_ref: (3*C_out, Kp) bf16  rows grouped by kx (row = kx*C_out + co),
                               cols = ky*C_in + ci, zero-padded to Kp
    x_ref: (Kp, TILE)    bf16  ky-stacked columns of one image (col = h*W + w)
    b_ref: (C_out, 1)    f32   bias
    o_ref: (C_out, TILE) f32   output columns (col = h*W + w)
    """
    t = o_ref.shape[-1]
    # One MXU GEMM produces the three kx partial sums stacked along sublanes.
    acc = jnp.dot(w_ref[...], x_ref[...], preferred_element_type=jnp.float32)
    p_left = acc[0 * c_out:1 * c_out, :]    # kx = 0 -> needs x[..., w - 1]
    p_mid = acc[1 * c_out:2 * c_out, :]     # kx = 1 -> aligned
    p_right = acc[2 * c_out:3 * c_out, :]   # kx = 2 -> needs x[..., w + 1]

    # Lane index within an image row.  Tile starts are multiples of img_w, so
    # this is tile-invariant, and the lanes that receive roll wrap-around are
    # exactly the lanes masked to zero (the conv's left/right zero padding).
    w_idx = jax.lax.broadcasted_iota(jnp.int32, (c_out, t), 1) % img_w
    left = jnp.where(w_idx == 0, 0.0, pltpu.roll(p_left, 1, axis=1))
    right = jnp.where(w_idx == img_w - 1, 0.0, pltpu.roll(p_right, t - 1, axis=1))

    o_ref[...] = (p_mid + left + right + b_ref[...]).astype(o_ref.dtype)


def _choose_col_tile(hw: int, w: int, max_lanes: int = 4096) -> int:
    """Column-tile size: every tile must start at a multiple of the image width
    (keeps the in-kernel kx masks tile-invariant); prefer multiples of 128 for
    unmasked lane-dense stores; cap for VMEM."""
    if hw <= max_lanes:
        return hw
    base = (w * 128) // math.gcd(w, 128)          # lcm(W, 128)
    if base > max_lanes:
        base = w
    return max(base, (max_lanes // base) * base)


def conv3x3_pallas(x, w, b):
    """3x3 same-padding conv, stride 1.  x: NCHW, w: OIHW, b: (C_out,)."""
    n, c_in, h, wd = x.shape
    c_out = w.shape[0]
    hw = h * wd

    # ---- wrapper prep: 3 ky-shifted copies (3x traffic, not 9x im2col) ------
    # x3 channel index = ky * C_in + ci ; spatial index = h * W + w (N-major,
    # no transpose -- just reshapes).
    x_padh = jnp.pad(x, ((0, 0), (0, 0), (1, 1), (0, 0)))        # pad H only
    x3 = jnp.concatenate(
        [x_padh[:, :, ky:ky + h, :] for ky in range(3)], axis=1
    ).reshape(n, 3 * c_in, hw)

    k = 3 * c_in
    kp = max(16, -(-k // 16) * 16)        # pad K to multiple of 16 (bf16 sublanes)
    if kp != k:
        x3 = jnp.pad(x3, ((0, 0), (0, kp - k), (0, 0)))
    x3 = x3.astype(jnp.bfloat16)

    # Weight rows grouped by kx (row = kx*C_out + co), cols = ky*C_in + ci.
    w_all = jnp.transpose(w, (3, 0, 2, 1)).reshape(3 * c_out, k)
    if kp != k:
        w_all = jnp.pad(w_all, ((0, 0), (0, kp - k)))
    w_all = w_all.astype(jnp.bfloat16)
    b2d = b.reshape(c_out, 1).astype(jnp.float32)

    # ---- grid / specs --------------------------------------------------------
    tile = _choose_col_tile(hw, wd)
    grid = (n, pl.cdiv(hw, tile))

    # Per-step VMEM (double-buffered x/out blocks + resident w/b) with headroom,
    # clamped to stay inside every generation's scoped-VMEM default.
    step_bytes = 2 * (kp * tile * 2 + c_out * tile * 4) + 3 * c_out * kp * 2 + c_out * 4
    vmem_limit = int(min(32 * 1024 * 1024, max(8 * 1024 * 1024, 4 * step_bytes)))

    cost = pl.CostEstimate(
        flops=2 * (3 * c_out) * kp * n * hw,
        bytes_accessed=(x3.size * 2 + w_all.size * 2 + b2d.size * 4
                        + n * c_out * hw * 4),
        transcendentals=0,
    )

    out_flat = pl.pallas_call(
        functools.partial(conv3x3_kernel, img_w=wd, c_out=c_out),
        out_shape=jax.ShapeDtypeStruct((n, c_out, hw), x.dtype),
        grid=grid,
        in_specs=[
            pl.BlockSpec((3 * c_out, kp), lambda i, j: (0, 0)),
            pl.BlockSpec((None, kp, tile), lambda i, j: (i, 0, j)),
            pl.BlockSpec((c_out, 1), lambda i, j: (0, 0)),
        ],
        out_specs=pl.BlockSpec((None, c_out, tile), lambda i, j: (i, 0, j)),
        compiler_params=pltpu.CompilerParams(
            dimension_semantics=("parallel", "parallel"),
            vmem_limit_bytes=vmem_limit,
        ),
        cost_estimate=cost,
    )(w_all, x3, b2d)

    # (N, C_out, H*W) -> (N, C_out, H, W): pure reshape, no transpose.
    return out_flat.reshape(n, c_out, h, wd)


def unconditioned_module_forward(x, cond=None, *, weight, bias):
    """UnconditionedModule.forward: ignore `cond`, run the wrapped module."""
    del cond  # UnconditionedModule discards the conditioning dict
    return conv3x3_pallas(x, weight, bias)


if __name__ == "__main__":
    N, C_IN, C_OUT, H, W = 2, 4, 8, 16, 16

    key = jax.random.PRNGKey(0)
    kx, kw, kb = jax.random.split(key, 3)
    x = jax.random.normal(kx, (N, C_IN, H, W), dtype=jnp.float32)
    # Deterministic synthetic Conv2d parameters (shapes per nn.Conv2d(4, 8, 3, padding=1)).
    fan_in = C_IN * 3 * 3
    bound = 1.0 / math.sqrt(fan_in)
    weight = jax.random.uniform(kw, (C_OUT, C_IN, 3, 3), jnp.float32, -bound, bound)
    bias = jax.random.uniform(kb, (C_OUT,), jnp.float32, -bound, bound)

    out = unconditioned_module_forward(x, cond={"ignored": True},
                                       weight=weight, bias=bias)
    out = jax.block_until_ready(out)

    # Reference check against XLA's conv (kernel computes in bf16 -> looser tol).
    ref = jax.lax.conv_general_dilated(
        x, weight, window_strides=(1, 1), padding="SAME",
        dimension_numbers=("NCHW", "OIHW", "NCHW"),
    ) + bias[None, :, None, None]
    assert out.shape == (N, C_OUT, H, W)
    max_err = float(jnp.max(jnp.abs(out - ref)))
    assert jnp.allclose(out, ref, atol=5e-2, rtol=5e-2), f"max abs err {max_err}"
    print("KERNEL_OK")
</pallas_src>

<mosaic_0001>
module attributes {stable_mosaic.version = 11 : i64} {
  func.func @conv3x3_kernel(%arg0: i32, %arg1: i32, %arg2: memref<24x16xbf16, #tpu.memory_space<vmem>>, %arg3: memref<1x16x256xbf16, #tpu.memory_space<vmem>>, %arg4: memref<8x1xf32, #tpu.memory_space<vmem>>, %arg5: memref<1x8x256xf32, #tpu.memory_space<vmem>>) attributes {dimension_semantics = [#tpu.dimension_semantics<parallel>, #tpu.dimension_semantics<parallel>], iteration_bounds = array<i64: 2, 1>, scalar_prefetch = 0 : i64, scratch_operands = 0 : i64, tpu.core_type = #tpu.core_type<tc>, window_params = [{pipeline_mode = #tpu.pipeline_mode<synchronous>, transform_indices = @transform_0, window_bounds = array<i64: 24, 16>}, {transform_indices = @transform_1, window_bounds = array<i64: 1, 16, 256>}, {pipeline_mode = #tpu.pipeline_mode<synchronous>, transform_indices = @transform_2, window_bounds = array<i64: 8, 1>}, {transform_indices = @transform_3, window_bounds = array<i64: 1, 8, 256>}]} {
    %c0 = arith.constant 0 : index
    %c0_0 = arith.constant 0 : index
    %0 = vector.load %arg2[%c0, %c0_0] : memref<24x16xbf16, #tpu.memory_space<vmem>>, vector<24x16xbf16>
    %c0_1 = arith.constant 0 : index
    %c0_2 = arith.constant 0 : index
    %c0_3 = arith.constant 0 : index
    %1 = vector.load %arg3[%c0_1, %c0_2, %c0_3] : memref<1x16x256xbf16, #tpu.memory_space<vmem>>, vector<1x16x256xbf16>
    %2 = vector.shape_cast %1 : vector<1x16x256xbf16> to vector<16x256xbf16>
    %cst = arith.constant dense<0.000000e+00> : vector<24x256xf32>
    %3 = tpu.matmul %0, %2, %cst {dimension_numbers = #tpu.dot_dimension_numbers<[1], [0], [0], [1], [0, 0, 1, 1], [], []>} : vector<24x16xbf16>, vector<16x256xbf16>, vector<24x256xf32> -> vector<24x256xf32>
    %4 = vector.extract_strided_slice %3 {offsets = [0, 0], sizes = [8, 256], strides = [1, 1]} : vector<24x256xf32> to vector<8x256xf32>
    %5 = vector.extract_strided_slice %3 {offsets = [8, 0], sizes = [8, 256], strides = [1, 1]} : vector<24x256xf32> to vector<8x256xf32>
    %6 = vector.extract_strided_slice %3 {offsets = [16, 0], sizes = [8, 256], strides = [1, 1]} : vector<24x256xf32> to vector<8x256xf32>
    %7 = tpu.iota {dimensions = array<i32: 1>} : vector<8x256xi32>
    %c16_i32 = arith.constant 16 : i32
    %c0_i32 = arith.constant 0 : i32
    %8 = arith.cmpi eq, %c16_i32, %c0_i32 : i32
    %c1_i32 = arith.constant 1 : i32
    %9 = arith.select %8, %c1_i32, %c16_i32 : i32
    %10 = vector.broadcast %9 : i32 to vector<8x256xi32>
    %11 = arith.remsi %7, %10 : vector<8x256xi32>
    %c0_i32_4 = arith.constant 0 : i32
    %12 = vector.broadcast %c0_i32_4 : i32 to vector<8x256xi32>
    %13 = arith.cmpi ne, %11, %12 : vector<8x256xi32>
    %c0_i32_5 = arith.constant 0 : i32
    %14 = vector.broadcast %c0_i32_5 : i32 to vector<8x256xi32>
    %15 = arith.cmpi slt, %11, %14 : vector<8x256xi32>
    %c0_i32_6 = arith.constant 0 : i32
    %16 = arith.cmpi slt, %9, %c0_i32_6 : i32
    %17 = vector.broadcast %16 : i1 to vector<8x256xi1>
    %18 = vector.broadcast %17 : vector<8x256xi1> to vector<8x256xi1>
    %19 = arith.xori %15, %18 : vector<8x256xi1>
    %20 = arith.andi %19, %13 : vector<8x256xi1>
    %21 = vector.broadcast %9 : i32 to vector<8x256xi32>
    %22 = arith.addi %11, %21 : vector<8x256xi32>
    %23 = arith.select %20, %22, %11 : vector<8x256xi1>, vector<8x256xi32>
    %c0_i32_7 = arith.constant 0 : i32
    %24 = vector.broadcast %c0_i32_7 : i32 to vector<8x256xi32>
    %25 = arith.cmpi eq, %23, %24 : vector<8x256xi32>
    %c1_i32_8 = arith.constant 1 : i32
    %26 = tpu.dynamic_rotate %4 by %c1_i32_8 dim 1 : vector<8x256xf32>, i32 -> vector<8x256xf32>
    %cst_9 = arith.constant 0.000000e+00 : f32
    %27 = vector.broadcast %cst_9 : f32 to vector<8x256xf32>
    %28 = arith.select %25, %27, %26 : vector<8x256xi1>, vector<8x256xf32>
    %c15_i32 = arith.constant 15 : i32
    %29 = vector.broadcast %c15_i32 : i32 to vector<8x256xi32>
    %30 = arith.cmpi eq, %23, %29 : vector<8x256xi32>
    %c255_i32 = arith.constant 255 : i32
    %31 = tpu.dynamic_rotate %6 by %c255_i32 dim 1 : vector<8x256xf32>, i32 -> vector<8x256xf32>
    %cst_10 = arith.constant 0.000000e+00 : f32
    %32 = vector.broadcast %cst_10 : f32 to vector<8x256xf32>
    %33 = arith.select %30, %32, %31 : vector<8x256xi1>, vector<8x256xf32>
    %34 = arith.addf %5, %28 : vector<8x256xf32>
    %35 = arith.addf %34, %33 : vector<8x256xf32>
    %c0_11 = arith.constant 0 : index
    %c0_12 = arith.constant 0 : index
    %36 = vector.load %arg4[%c0_11, %c0_12] : memref<8x1xf32, #tpu.memory_space<vmem>>, vector<8x1xf32>
    %37 = vector.broadcast %36 : vector<8x1xf32> to vector<8x256xf32>
    %38 = arith.addf %35, %37 : vector<8x256xf32>
    %c0_13 = arith.constant 0 : index
    %c0_14 = arith.constant 0 : index
    %c0_15 = arith.constant 0 : index
    %39 = vector.load %arg5[%c0_13, %c0_14, %c0_15] : memref<1x8x256xf32, #tpu.memory_space<vmem>>, vector<1x8x256xf32>
    %40 = vector.shape_cast %39 : vector<1x8x256xf32> to vector<8x256xf32>
    %41 = vector.shape_cast %38 : vector<8x256xf32> to vector<1x8x256xf32>
    tpu.vector_store %arg5[%c0_13, %c0_14, %c0_15], %41 {strides = array<i32>} : memref<1x8x256xf32, #tpu.memory_space<vmem>>, vector<1x8x256xf32>,
    return
  }
  func.func @transform_0(%arg0: i32, %arg1: i32) -> (i32, i32) {
    %c0_i32 = arith.constant 0 : i32
    %c0_i32_0 = arith.constant 0 : i32
    %c0_i32_1 = arith.constant 0 : i32
    return %c0_i32, %c0_i32_0 : i32, i32
  }
  func.func @transform_1(%arg0: i32, %arg1: i32) -> (i32, i32, i32) {
    %c0_i32 = arith.constant 0 : i32
    %c0_i32_0 = arith.constant 0 : i32
    return %arg0, %c0_i32, %arg1 : i32, i32, i32
  }
  func.func @transform_2(%arg0: i32, %arg1: i32) -> (i32, i32) {
    %c0_i32 = arith.constant 0 : i32
    %c0_i32_0 = arith.constant 0 : i32
    %c0_i32_1 = arith.constant 0 : i32
    return %c0_i32, %c0_i32_0 : i32, i32
  }
  func.func @transform_3(%arg0: i32, %arg1: i32) -> (i32, i32, i32) {
    %c0_i32 = arith.constant 0 : i32
    %c0_i32_0 = arith.constant 0 : i32
    return %arg0, %c0_i32, %arg1 : i32, i32, i32
  }
}

</mosaic_0001>

<llo_original>
// kernel: tpu_custom_call.1
$region0: #{tpu_custom_call.1}
  #allocation0 [shape = 'u32[]', space=smem, size = 0x4, offset = 0x4, fixed_abs, tag = 'smem constant byte address 0x4 - core index']
  #allocation1 [shape = 'u32[72,128]{1,0:T(1,128)}', space=vmem, size = 0x9000, scoped, tag = 'internal scratch']
  %s0 = inlined_call_operand.vmem [shape: bf16[24,16], index: 0, kind: input, shape index: {}]
  %s1 = inlined_call_operand.hbm [shape: bf16[2,16,256], index: 1, kind: input, shape index: {}]
  %s2 = inlined_call_operand.vmem [shape: f32[8,1], index: 2, kind: input, shape index: {}]
  %s3 = inlined_call_operand.hbm [shape: f32[2,8,256], index: 3, kind: output, shape index: {}]
  %s4 = sld [smem:[#allocation0]]
  $region49: #{tpu_custom_call.1} parent=0
    _
  %s6 = ssub.s32 1, %s4
  %s7 = scalar_select 0, %s6, %s4
  $region1: #{tpu_custom_call.1} parent=0
    #allocation2 [shape = 'u8[16384]{0}', space=vmem, size = 0x4000, scoped, tag = 'input window, operand 1']
    #allocation3 [shape = 's32[2]{0}', space=sflag, size = 0x8, scoped, tag = 'scoped memory for tpu_custom_call.1']
    #allocation4 [shape = 's32[2]{0}', space=sflag, size = 0x8, scoped, tag = 'scoped memory for tpu_custom_call.1']
    #allocation5 [shape = 'u8[16384]{0}', space=vmem, size = 0x4000, scoped, tag = 'output window, operand 0']
    %8 = vsyncpa [#allocation3], 0
    %s9 = scalar_lea.sflag [#allocation3], 1
    %10 = vsyncpa %s9, 0
    %11 = vsyncpa [#allocation4], 0
    %s12 = scalar_lea.sflag [#allocation4], 1
    %13 = vsyncpa %s12, 0
    loop: start=0, step=1, limit=4
    $region2: #{tpu_custom_call.1} parent=1 // loop_pre_header
      _
    $region3: #{tpu_custom_call.1} parent=1 // loop_header
      %s15 = sphi 0, %s19
      %p16 = scmp.ge.s32.totalorder %s15, 4
      %s22 = sphi 0, %s34
      %s23 = sphi 0, %s30
      %s24 = sphi 0, %s22
      %s25 = sphi 0, %s23
      %s26 = sphi 0, %s24
      %s27 = sphi 0, %s25
      %s35 = sphi 0, %s35
      %s37 = sphi 0, %s35
      %s38 = sphi 0, %s37
      %s52 = sphi 0, %s38
      %s60 = sphi 0, %s62
      %s63 = sphi 0, %s60
      %s64 = sphi 0, %s63
      %s80 = sphi 0, %s64
      %s84 = sphi 0, %s84
      %s86 = sphi 0, %s84
      %s87 = sphi 0, %s86
      %s101 = sphi 0, %s87
      %s109 = sphi 0, %s111
      %s112 = sphi 0, %s109
      %s113 = sphi 0, %s112
      %s129 = sphi 0, %s113
    $region4: #{tpu_custom_call.1} parent=1 // loop_header_branch
      %18 = sbr.rel (%p16) target = $region8
    $region5: #{tpu_custom_call.1} parent=1 // loop_body
      %s20 = ssub.s32 %s15, 1
      %s21 = ssub.s32 %s15, 2
      %s28 = sadd.s32 1, %s23
      %p29 = scmp.ge.s32.totalorder %s28, 1
      %s30 = scalar_select %p29, 0, %s28
      %s31 = sadd.s32 1, %s22
      %s32 = scalar_select %p29, %s31, %s22
      %p33 = scmp.ge.s32.totalorder %s32, 2
      %s34 = scalar_select %p33, 0, %s32
      %s36 = sadd.s32 %s35, 1
      %p39 = scmp.eq.s32.totalorder %s15, 1
      %p40 = scmp.ne.s32.totalorder %s35, %s37
      %p41 = scmp.eq.s32.totalorder %s15, 0
      %p42 = por %p40, %p41
      %p43 = scmp.ne.s32.totalorder %s35, %s37
      %p44 = scmp.eq.s32.totalorder %s20, 1
      %p45 = por %p43, %p44
      %p46 = scmp.ne.s32.totalorder %s37, %s38
      %p47 = scmp.eq.s32.totalorder %s20, 0
      %p48 = por %p46, %p47
      %p49 = scmp.ne.s32.totalorder %s37, %s38
      %p50 = scmp.eq.s32.totalorder %s21, 1
      %p51 = por %p49, %p50
      %p53 = scmp.ne.s32.totalorder %s38, %s52
      %p54 = scmp.eq.s32.totalorder %s21, 0
      %p55 = por %p53, %p54
      %s56 = ssub.s32 %s22, %s34
      %s57 = ssub.s32 %s23, %s30
      %s58 = sor.u32 %s56, %s57
      %p59 = scmp.eq.s32.totalorder %s58, 0
      %s61 = sadd.s32 %s60, 1
      %s62 = scalar_select %p59, %s60, %s61
      %p65 = pneg %p59
      %p66 = scmp.eq.s32.totalorder %s15, 1
      %p67 = por %p65, %p66
      %p68 = scmp.ne.s32.totalorder %s60, %s63
      %p69 = scmp.eq.s32.totalorder %s15, 0
      %p70 = por %p68, %p69
      %p71 = scmp.ne.s32.totalorder %s60, %s63
      %p72 = scmp.eq.s32.totalorder %s20, 1
      %p73 = por %p71, %p72
      %p74 = scmp.ne.s32.totalorder %s63, %s64
      %p75 = scmp.eq.s32.totalorder %s20, 0
      %p76 = por %p74, %p75
      %p77 = scmp.ne.s32.totalorder %s63, %s64
      %p78 = scmp.eq.s32.totalorder %s21, 1
      %p79 = por %p77, %p78
      %p81 = scmp.ne.s32.totalorder %s64, %s80
      %p82 = scmp.eq.s32.totalorder %s21, 0
      %p83 = por %p81, %p82
      %s85 = sadd.s32 %s84, 1
      %p88 = scmp.eq.s32.totalorder %s15, 1
      %p89 = scmp.ne.s32.totalorder %s84, %s86
      %p90 = scmp.eq.s32.totalorder %s15, 0
      %p91 = por %p89, %p90
      %p92 = scmp.ne.s32.totalorder %s84, %s86
      %p93 = scmp.eq.s32.totalorder %s20, 1
      %p94 = por %p92, %p93
      %p95 = scmp.ne.s32.totalorder %s86, %s87
      %p96 = scmp.eq.s32.totalorder %s20, 0
      %p97 = por %p95, %p96
      %p98 = scmp.ne.s32.totalorder %s86, %s87
      %p99 = scmp.eq.s32.totalorder %s21, 1
      %p100 = por %p98, %p99
      %p102 = scmp.ne.s32.totalorder %s87, %s101
      %p103 = scmp.eq.s32.totalorder %s21, 0
      %p104 = por %p102, %p103
      %s105 = ssub.s32 %s22, %s34
      %s106 = ssub.s32 %s23, %s30
      %s107 = sor.u32 %s105, %s106
      %p108 = scmp.eq.s32.totalorder %s107, 0
      %s110 = sadd.s32 %s109, 1
      %s111 = scalar_select %p108, %s109, %s110
      %p114 = pneg %p108
      %p115 = scmp.eq.s32.totalorder %s15, 1
      %p116 = por %p114, %p115
      %p117 = scmp.ne.s32.totalorder %s109, %s112
      %p118 = scmp.eq.s32.totalorder %s15, 0
      %p119 = por %p117, %p118
      %p120 = scmp.ne.s32.totalorder %s109, %s112
      %p121 = scmp.eq.s32.totalorder %s20, 1
      %p122 = por %p120, %p121
      %p123 = scmp.ne.s32.totalorder %s112, %s113
      %p124 = scmp.eq.s32.totalorder %s20, 0
      %p125 = por %p123, %p124
      %p126 = scmp.ne.s32.totalorder %s112, %s113
      %p127 = scmp.eq.s32.totalorder %s21, 1
      %p128 = por %p126, %p127
      %p130 = scmp.ne.s32.totalorder %s113, %s129
      %p131 = scmp.eq.s32.totalorder %s21, 0
      %p132 = por %p130, %p131
      %p133 = scmp.le.s32.totalorder 1, %s15
      %p134 = scmp.lt.s32.totalorder %s15, 3
      %p135 = pnand %p133, %p134
      %p136 = pneg %p135
      // Predicated region
      $region9: #{tpu_custom_call.1} parent=5 // pred_check
        _
      $region10: #{tpu_custom_call.1} parent=5 // pred_check_branch
        %138 = sbr.rel (%p135) target = $region12
      $region11: #{tpu_custom_call.1} parent=5 // pred_region
        %s139 = ssub.s32 %s15, 1
        // Predicated region
        $region13: #{tpu_custom_call.1} parent=11 // pred_check
          %p140 = pneg %p48
        $region14: #{tpu_custom_call.1} parent=11 // pred_check_branch
          %142 = sbr.rel (%p140) target = $region16
        $region15: #{tpu_custom_call.1} parent=11 // pred_region
          _
        $region16: #{tpu_custom_call.1} parent=11 // pred_fallthru
          _
        // Predicated region
        $region17: #{tpu_custom_call.1} parent=11 // pred_check
          %p143 = pneg %p97
        $region18: #{tpu_custom_call.1} parent=11 // pred_check_branch
          %145 = sbr.rel (%p143) target = $region20
        $region19: #{tpu_custom_call.1} parent=11 // pred_region
          _
        $region20: #{tpu_custom_call.1} parent=11 // pred_fallthru
          _
      $region12: #{tpu_custom_call.1} parent=5 // pred_fallthru
        _
      %p146 = scmp.lt.s32.totalorder %s15, 2
      // Predicated region
      $region21: #{tpu_custom_call.1} parent=5 // pred_check
        %p147 = pneg %p146
      $region22: #{tpu_custom_call.1} parent=5 // pred_check_branch
        %149 = sbr.rel (%p147) target = $region24
      $region23: #{tpu_custom_call.1} parent=5 // pred_region
        // Predicated region
        $region25: #{tpu_custom_call.1} parent=23 // pred_check
          %p150 = pneg %p70
        $region26: #{tpu_custom_call.1} parent=23 // pred_check_branch
          %152 = sbr.rel (%p150) target = $region28
        $region27: #{tpu_custom_call.1} parent=23 // pred_region
          %s153 = sand.u32 %s60, 1
          %s154 = scalar_lea.sflag [#allocation3], %s153
          %s155 = sand.u32 %s60, 1
          %s156 = smul.addr %s155, 16
          %s157 = scalar_lea.vmem [#allocation2], %s156
          %s158 = smul.u32 2, %s23
          %160 = vsyncadd %s154, 0
          %s161 = smul.addr %s22, 4
          %s162 = sadd.s32 %s158, %s161
          %s163 = smul.addr %s162, 4
          %s164 = scalar_lea.hbm %s1, %s163
          %s165 = sshll.u32 %s164, 4
          %s166 = int_to_ptr.hbm [resolvable:$true] %s165
          %s167 = sshll.u32 %s157, 4
          %s168 = int_to_ptr.vmem [resolvable:$true] %s167
          %173 = dma.hbm_to_vmem [thread:$0]  %s166, 256, %s168, %s154, 128, 128, 8
        $region28: #{tpu_custom_call.1} parent=23 // pred_fallthru
          _
      $region24: #{tpu_custom_call.1} parent=5 // pred_fallthru
        _
      %p174 = scmp.le.s32.totalorder 1, %s15
      %p175 = scmp.lt.s32.totalorder %s15, 3
      %p176 = pnand %p174, %p175
      %p177 = pneg %p176
      // Predicated region
      $region29: #{tpu_custom_call.1} parent=5 // pred_check
        _
      $region30: #{tpu_custom_call.1} parent=5 // pred_check_branch
        %179 = sbr.rel (%p176) target = $region32
      $region31: #{tpu_custom_call.1} parent=5 // pred_region
        %s180 = ssub.s32 %s15, 1
        %s181 = sand.u32 %s63, 1
        %s182 = scalar_lea.sflag [#allocation3], %s181
        %s183 = sand.u32 %s63, 1
        %s184 = smul.addr %s183, 16
        %s185 = scalar_lea.vmem [#allocation2], %s184
        // Predicated region
        $region33: #{tpu_custom_call.1} parent=31 // pred_check
          %p186 = pneg %p76
        $region34: #{tpu_custom_call.1} parent=31 // pred_check_branch
          %188 = sbr.rel (%p186) target = $region36
        $region35: #{tpu_custom_call.1} parent=31 // pred_region
          %190 = dma.done %s182, 256
        $region36: #{tpu_custom_call.1} parent=31 // pred_fallthru
          _
        %p191 = pneg %p48
        %p192 = pneg %p45
        %s193 = sand.u32 %s63, 1
        %s194 = scalar_lea.sflag [#allocation3], %s193
        %s195 = sand.u32 %s63, 1
        %s196 = smul.addr %s195, 16
        %s197 = scalar_lea.vmem [#allocation2], %s196
        %p198 = pneg %p76
        %p199 = pneg %p73
        %p200 = pneg %p97
        %p201 = pneg %p94
        %p202 = pneg %p125
        %p203 = pneg %p122
        %s204 = sand.u32 %s112, 1
        %s205 = scalar_lea.sflag [#allocation4], %s204
        %s206 = sand.u32 %s112, 1
        %s207 = smul.addr %s206, 16
        %s208 = scalar_lea.vmem [#allocation5], %s207
        %s209 = smul.u32 2, %s25
        %s210 = smul.u32 2, %s25
        %v212 = vld [vmem:[%s0] sm:$0xf]
        %v213 = vld [vmem:[%s0 + $0x4] sm:$0xf]
        %v214 = vld [vmem:[%s0 + $0x8] sm:$0xf]
        %v215 = vld [vmem:[%s185] sm:$0xff]
        %v216 = vld [vmem:[%s185 + $0x8] sm:$0xff]
        %v220 = vunpack.c.l.b16 %v212
        %v221 = vunpack.c.l.b16 %v213
        %v222 = vunpack.c.l.b16 %v214
        %v223 = vpack.c.b16 %v221, %v220
        %v224 = vpack.c.b16 %v222, %v222
        %v227 = vunpack.c.l.b16 %v215
        %v228 = vunpack.c.h.b16 %v215
        %v229 = vunpack.c.l.b16 %v216
        %v230 = vunpack.c.h.b16 %v216
        %v231 = vpack.c.b16 %v229, %v227
        %v232 = vpack.c.b16 %v230, %v228
        %vm235 = vcmask 130048
        %v237 = vsel %vm235, %v223, 0
        %v240 = vsel %vm235, %v224, 0
        %242 = vmatpush.bf16.msra.mxu0 0
        %243 = vmatpush.bf16.msra.mxu0 0
        %244 = vmatpush.bf16.msra.mxu0 0
        %245 = vmatpush.bf16.msra.mxu0 0
        %246 = vmatpush.bf16.msra.mxu0 0
        %247 = vmatpush.bf16.msra.mxu0 0
        %248 = vmatpush.bf16.msra.mxu0 0
        %249 = vmatpush.bf16.msra.mxu0 %v231
        %250 = vmatmul.bf16.gmra.mxu0 %v237
        %v251 = vpop.f32.mrf.mxu0
        %v252 = vadd.f32 0.0, %v251
        %v253 = vpop.f32.mrf.mxu0
        %v254 = vadd.f32 0.0, %v253
        %255 = vmatmul.bf16.gmra.mxu0 %v240
        %v256 = vpop.f32.mrf.mxu0
        %v257 = vadd.f32 0.0, %v256
        %v258 = vpop.f32.mrf.mxu0
        %259 = vdwg.mxu0
        %260 = vmatpush.bf16.msra.mxu0 0
        %261 = vmatpush.bf16.msra.mxu0 0
        %262 = vmatpush.bf16.msra.mxu0 0
        %263 = vmatpush.bf16.msra.mxu0 0
        %264 = vmatpush.bf16.msra.mxu0 0
        %265 = vmatpush.bf16.msra.mxu0 0
        %266 = vmatpush.bf16.msra.mxu0 0
        %267 = vmatpush.bf16.msra.mxu0 %v232
        %268 = vmatmul.bf16.gmra.mxu0 %v237
        %v269 = vpop.f32.mrf.mxu0
        %v270 = vadd.f32 0.0, %v269
        %v271 = vpop.f32.mrf.mxu0
        %v272 = vadd.f32 0.0, %v271
        %273 = vmatmul.bf16.gmra.mxu0 %v240
        %v274 = vpop.f32.mrf.mxu0
        %v275 = vadd.f32 0.0, %v274
        %v276 = vpop.f32.mrf.mxu0
        %277 = vdwg.mxu0
        %v278 = vlaneseq
        %v279 = vand.u32 %v278, 127
        %v280 = vadd.s32 %v279, 128
        %vm281 = vcmp.lt.s32.totalorder %v279, 0
        %v282 = vsub.s32 0, %v279
        %v283 = vsel %vm281, %v282, %v279
        %v284 = vshrl.u32 %v283, 4
        %v285 = vand.u32 %v283, 15
        %v286 = vsub.s32 0, %v285
        %v287 = vsel %vm281, %v286, %v285
        %vm288 = vcmp.lt.s32.totalorder %v280, 0
        %v289 = vsub.s32 0, %v280
        %v290 = vsel %vm288, %v289, %v280
        %v291 = vshrl.u32 %v290, 4
        %v292 = vand.u32 %v290, 15
        %v293 = vsub.s32 0, %v292
        %v294 = vsel %vm288, %v293, %v292
        %vm295 = vcmp.ne.s32.totalorder %v287, 0
        %vm296 = vcmp.ne.s32.totalorder %v294, 0
        %vm297 = vcmp.lt.s32.totalorder %v287, 0
        %vm298 = vcmp.lt.s32.totalorder %v294, 0
        %vm299 = vmand %vm297, %vm295
        %vm300 = vmand %vm298, %vm296
        %v301 = vadd.s32 %v287, 16
        %v302 = vadd.s32 %v294, 16
        %v303 = vsel %vm299, %v301, %v287
        %v304 = vsel %vm300, %v302, %v294
        %vm305 = vcmp.eq.s32.totalorder %v303, 0
        %vm306 = vcmp.eq.s32.totalorder %v304, 0
        %307 = vrot.lane.b32.xlu0 %v252, 1
        %v308 = vpop.permute.xlu0 %307
        %309 = vrot.lane.b32.xlu0 %v270, 1
        %v310 = vpop.permute.xlu0 %309
        %vm311 = vcmp.lt.s32.totalorder %v279, 1
        %v312 = vsel %vm311, %v308, %v310
        %v313 = vsel %vm311, %v310, %v308
        %v314 = vsel %vm305, 0.0, %v313
        %v315 = vsel %vm306, 0.0, %v312
        %vm316 = vcmp.eq.s32.totalorder %v303, 15
        %vm317 = vcmp.eq.s32.totalorder %v304, 15
        %318 = vrot.lane.b32.xlu0 %v257, 127
        %v319 = vpop.permute.xlu0 %318
        %320 = vrot.lane.b32.xlu0 %v275, 127
        %v321 = vpop.permute.xlu0 %320
        %vm322 = vcmp.lt.s32.totalorder %v279, 127
        %v323 = vsel %vm322, %v319, %v321
        %v324 = vsel %vm322, %v321, %v319
        %v325 = vsel %vm316, 0.0, %v323
        %v326 = vsel %vm317, 0.0, %v324
        %v327 = vadd.f32 %v254, %v314
        %v328 = vadd.f32 %v272, %v315
        %v329 = vadd.f32 %v327, %v325
        %v330 = vadd.f32 %v328, %v326
        %v331 = vld [vmem:[%s2] sm:$0xff]
        %333 = vset.pattern.permute.xlu0 0
        %334 = vperm.xlu0 %333, %v331
        %v335 = vpop.permute.xlu0 %334
        %v337 = vadd.f32 %v329, %v335
        %v338 = vadd.f32 %v330, %v335
        %339 = vst [vmem:[%s208] sm:$0xff] %v337
        %340 = vst [vmem:[%s208 + $0x8] sm:$0xff] %v338
        %s341 = sand.u32 %s112, 1
        %s342 = scalar_lea.sflag [#allocation4], %s341
        %s343 = sand.u32 %s112, 1
        %s344 = smul.addr %s343, 16
        %s345 = scalar_lea.vmem [#allocation5], %s344
        // Predicated region
        $region37: #{tpu_custom_call.1} parent=31 // pred_check
          %p346 = pneg %p122
        $region38: #{tpu_custom_call.1} parent=31 // pred_check_branch
          %348 = sbr.rel (%p346) target = $region40
        $region39: #{tpu_custom_call.1} parent=31 // pred_region
          %s349 = smul.u32 2, %s25
          %351 = vsyncadd %s342, 0
          %s352 = smul.addr %s24, 2
          %s353 = sadd.s32 %s349, %s352
          %s354 = smul.addr %s353, 8
          %s355 = scalar_lea.hbm %s3, %s354
          %s357 = sshll.u32 %s345, 4
          %s358 = int_to_ptr.vmem [resolvable:$true] %s357
          %s359 = sshll.u32 %s355, 4
          %s360 = int_to_ptr.hbm [resolvable:$true] %s359
          %362 = dma.vmem_to_hbm [thread:$0]  %s358, 256, %s360, %s342
        $region40: #{tpu_custom_call.1} parent=31 // pred_fallthru
          _
      $region32: #{tpu_custom_call.1} parent=5 // pred_fallthru
        _
      %p363 = scmp.le.s32.totalorder 2, %s15
      // Predicated region
      $region41: #{tpu_custom_call.1} parent=5 // pred_check
        %p364 = pneg %p363
      $region42: #{tpu_custom_call.1} parent=5 // pred_check_branch
        %366 = sbr.rel (%p364) target = $region44
      $region43: #{tpu_custom_call.1} parent=5 // pred_region
        %s367 = ssub.s32 %s15, 2
        // Predicated region
        $region45: #{tpu_custom_call.1} parent=43 // pred_check
          %p368 = pneg %p128
        $region46: #{tpu_custom_call.1} parent=43 // pred_check_branch
          %370 = sbr.rel (%p368) target = $region48
        $region47: #{tpu_custom_call.1} parent=43 // pred_region
          %s371 = sand.u32 %s113, 1
          %s372 = scalar_lea.sflag [#allocation4], %s371
          %s373 = sand.u32 %s113, 1
          %s374 = smul.addr %s373, 16
          %s375 = scalar_lea.vmem [#allocation5], %s374
          %377 = dma.done %s372, 256
        $region48: #{tpu_custom_call.1} parent=43 // pred_fallthru
          _
      $region44: #{tpu_custom_call.1} parent=5 // pred_fallthru
        _
    $region6: #{tpu_custom_call.1} parent=1 // loop_footer
      %s19 = sadd.s32 1, %s15
    $region7: #{tpu_custom_call.1} parent=1 // loop_footer_branch
      %14 = sbr.rel target = $region3
    $region8: #{tpu_custom_call.1} parent=1 // loop_exit
      _
    %378 = vsyncpa [#allocation3], 1
    %s379 = scalar_lea.sflag [#allocation3], 1
    %380 = vsyncpa %s379, 1
    %381 = vsyncpa [#allocation4], 1
    %s382 = scalar_lea.sflag [#allocation4], 1
    %383 = vsyncpa %s382, 1

</llo_original>
